<compile_context>
chip_gen: v5e
topology: v5e:2x2
jax: 0.10.0
libtpu: 0.0.40
codegen_flags: <defaults>
</compile_context>

<pallas_src>
import functools

import jax
import jax.numpy as jnp
from jax.experimental import pallas as pl
from jax.experimental.pallas import tpu as pltpu


_VMEM_LIMIT = 32 * 1024 * 1024   # safe ceiling on v5e / v6e / v7x; all tiles stay well under


def _pick_tile(size, desired, align):
    """Largest tile <= desired that divides `size` and is a multiple of `align`.
    Falls back to the full axis (a full-extent block is always a legal BlockSpec)."""
    if size <= desired:
        return size
    t = (desired // align) * align
    while t >= align:
        if size % t == 0:
            return t
        t -= align
    return size


# --------------------------------------------------------------------------- tiled linear
def _linear_kernel(x_ref, w_ref, b_ref, o_ref, acc_ref):
    @pl.when(pl.program_id(2) == 0)
    def _init():
        acc_ref[...] = jnp.zeros_like(acc_ref)

    # bf16 operands on the MXU, f32 accumulation
    acc_ref[...] += jnp.dot(x_ref[...], w_ref[...],
                            preferred_element_type=jnp.float32)

    @pl.when(pl.program_id(2) == pl.num_programs(2) - 1)
    def _fin():
        o_ref[...] = (acc_ref[...] + b_ref[...].astype(jnp.float32)).astype(o_ref.dtype)


def pallas_linear(x2d, w, b, *, tm=256, tn=256, tk=1024):
    """x2d (M,K) bf16 @ w (K,N) bf16 + b (N,) f32 -> (M,N) bf16."""
    M, K = x2d.shape
    _, N = w.shape
    tm = _pick_tile(M, tm, 128)
    tn = _pick_tile(N, tn, 128)
    tk = _pick_tile(K, tk, 128)
    cost = pl.CostEstimate(
        flops=2 * M * K * N, transcendentals=0,
        bytes_accessed=(M * K + K * N + M * N) * x2d.dtype.itemsize + N * 4)
    return pl.pallas_call(
        _linear_kernel,
        out_shape=jax.ShapeDtypeStruct((M, N), x2d.dtype),
        grid=(M // tm, N // tn, K // tk),
        in_specs=[pl.BlockSpec((tm, tk), lambda i, j, k: (i, k)),
                  pl.BlockSpec((tk, tn), lambda i, j, k: (k, j)),
                  pl.BlockSpec((1, tn), lambda i, j, k: (0, j))],
        out_specs=pl.BlockSpec((tm, tn), lambda i, j, k: (i, j)),
        scratch_shapes=[pltpu.VMEM((tm, tn), jnp.float32)],
        compiler_params=pltpu.CompilerParams(
            dimension_semantics=("parallel", "parallel", "arbitrary"),
            vmem_limit_bytes=_VMEM_LIMIT),
        cost_estimate=cost,
    )(x2d, w, b.reshape(1, -1))


# --------------------------------------------------------------------------- fused q+kv projection
def _qkv_kernel(x_ref, wq_ref, bq_ref, wkv_ref, bkv_ref,
                q_ref, kv_ref, q_acc, kv_acc):
    kk = pl.program_id(1)

    @pl.when(kk == 0)
    def _init():
        q_acc[...] = jnp.zeros_like(q_acc)
        kv_acc[...] = jnp.zeros_like(kv_acc)

    x = x_ref[...]                      # read x tile once, feed both matmuls (bf16)
    q_acc[...] += jnp.dot(x, wq_ref[...], preferred_element_type=jnp.float32)
    kv_acc[...] += jnp.dot(x, wkv_ref[...], preferred_element_type=jnp.float32)

    @pl.when(kk == pl.num_programs(1) - 1)
    def _fin():
        q_ref[...] = (q_acc[...] + bq_ref[...].astype(jnp.float32)).astype(q_ref.dtype)
        kv_ref[...] = (kv_acc[...] + bkv_ref[...].astype(jnp.float32)).astype(kv_ref.dtype)


def pallas_qkv(x2d, wq, bq, wkv, bkv, *, tm=256, tk=1024):
    M, K = x2d.shape
    Nq = wq.shape[1]
    Nkv = wkv.shape[1]
    tm = _pick_tile(M, tm, 128)
    tk = _pick_tile(K, tk, 128)
    nb = x2d.dtype.itemsize
    cost = pl.CostEstimate(
        flops=2 * M * K * (Nq + Nkv), transcendentals=0,
        bytes_accessed=(M * K + K * (Nq + Nkv) + M * (Nq + Nkv)) * nb)
    return pl.pallas_call(
        _qkv_kernel,
        out_shape=(jax.ShapeDtypeStruct((M, Nq), x2d.dtype),
                   jax.ShapeDtypeStruct((M, Nkv), x2d.dtype)),
        grid=(M // tm, K // tk),
        in_specs=[pl.BlockSpec((tm, tk), lambda i, k: (i, k)),
                  pl.BlockSpec((tk, Nq), lambda i, k: (k, 0)),
                  pl.BlockSpec((1, Nq), lambda i, k: (0, 0)),
                  pl.BlockSpec((tk, Nkv), lambda i, k: (k, 0)),
                  pl.BlockSpec((1, Nkv), lambda i, k: (0, 0))],
        out_specs=(pl.BlockSpec((tm, Nq), lambda i, k: (i, 0)),
                   pl.BlockSpec((tm, Nkv), lambda i, k: (i, 0))),
        scratch_shapes=[pltpu.VMEM((tm, Nq), jnp.float32),
                        pltpu.VMEM((tm, Nkv), jnp.float32)],
        compiler_params=pltpu.CompilerParams(
            dimension_semantics=("parallel", "arbitrary"),
            vmem_limit_bytes=_VMEM_LIMIT),
        cost_estimate=cost,
    )(x2d, wq, bq.reshape(1, -1), wkv, bkv.reshape(1, -1))


# --------------------------------------------------------------------------- fused sr-conv + LayerNorm
def _conv_ln_kernel(p_ref, w_ref, b_ref, g_ref, beta_ref, o_ref, acc_ref, *, eps):
    kk = pl.program_id(1)

    @pl.when(kk == 0)
    def _init():
        acc_ref[...] = jnp.zeros_like(acc_ref)

    acc_ref[...] += jnp.dot(p_ref[...], w_ref[...], preferred_element_type=jnp.float32)

    @pl.when(kk == pl.num_programs(1) - 1)
    def _fin():
        y = acc_ref[...] + b_ref[...].astype(jnp.float32)
        mu = jnp.mean(y, axis=-1, keepdims=True)
        var = jnp.mean((y - mu) * (y - mu), axis=-1, keepdims=True)
        y = (y - mu) * jax.lax.rsqrt(var + eps)
        o_ref[...] = (y * g_ref[...].astype(jnp.float32)
                      + beta_ref[...].astype(jnp.float32)).astype(o_ref.dtype)


def pallas_conv_ln(p2d, w, b, gamma, beta, *, eps=1e-5, tm=256, tk=1024):
    """Strided conv (kernel==stride) as a patch matmul (K-tiled, f32 acc) fused with LayerNorm."""
    M, K = p2d.shape
    D = w.shape[1]
    tm = _pick_tile(M, tm, 128)
    tk = _pick_tile(K, tk, 128)
    nb = p2d.dtype.itemsize
    cost = pl.CostEstimate(flops=2 * M * K * D + 8 * M * D, transcendentals=M,
                           bytes_accessed=(M * K + K * D + M * D) * nb)
    return pl.pallas_call(
        functools.partial(_conv_ln_kernel, eps=eps),
        out_shape=jax.ShapeDtypeStruct((M, D), p2d.dtype),
        grid=(M // tm, K // tk),
        in_specs=[pl.BlockSpec((tm, tk), lambda i, k: (i, k)),
                  pl.BlockSpec((tk, D), lambda i, k: (k, 0)),
                  pl.BlockSpec((1, D), lambda i, k: (0, 0)),
                  pl.BlockSpec((1, D), lambda i, k: (0, 0)),
                  pl.BlockSpec((1, D), lambda i, k: (0, 0))],
        out_specs=pl.BlockSpec((tm, D), lambda i, k: (i, 0)),
        scratch_shapes=[pltpu.VMEM((tm, D), jnp.float32)],
        compiler_params=pltpu.CompilerParams(
            dimension_semantics=("parallel", "arbitrary"),
            vmem_limit_bytes=_VMEM_LIMIT),
        cost_estimate=cost,
    )(p2d, w, b.reshape(1, -1), gamma.reshape(1, -1), beta.reshape(1, -1))


# --------------------------------------------------------------------------- flash attention + fused out-proj
def _attn_kernel(q_ref, kv_ref, wp_ref, bp_ref, o_ref,
                 m_ref, l_ref, acc_ref, *, head, head_dim):
    kvi = pl.program_id(2)
    inner = head * head_dim

    @pl.when(kvi == 0)
    def _init():
        m_ref[...] = jnp.full_like(m_ref, -jnp.inf)
        l_ref[...] = jnp.zeros_like(l_ref)
        acc_ref[...] = jnp.zeros_like(acc_ref)

    q = q_ref[0]                        # (tq,  H*hd) bf16, softmax scale pre-folded into wq
    kv = kv_ref[0]                      # (tkv, 2*H*hd) bf16, packed [k | v]

    m_prev = m_ref[...]                 # (tq, head)
    l_prev = l_ref[...]                 # (tq, head)
    acc_prev = acc_ref[...]             # (tq, H*hd)

    # Online softmax over all heads of this (batch, q-tile); per-head results are
    # batched into locals and written back with ONE full-width store per buffer.
    m_cols, l_cols, acc_cols = [], [], []
    for h in range(head):
        sl = slice(h * head_dim, (h + 1) * head_dim)
        vsl = slice(inner + h * head_dim, inner + (h + 1) * head_dim)
        # bf16 QK^T (same transposed-RHS dot_general pattern as the reference TPU
        # flash-attention kernel), f32 accumulation.
        s = jax.lax.dot_general(q[:, sl], kv[:, sl], (((1,), (1,)), ((), ())),
                                preferred_element_type=jnp.float32)        # (tq, tkv)
        m_h = jnp.maximum(m_prev[:, h:h + 1], jnp.max(s, axis=-1, keepdims=True))
        alpha = jnp.exp(m_prev[:, h:h + 1] - m_h)                          # (tq, 1)
        p = jnp.exp(s - m_h)                                               # f32
        l_h = alpha * l_prev[:, h:h + 1] + jnp.sum(p, axis=-1, keepdims=True)
        pv = jax.lax.dot_general(p.astype(kv.dtype), kv[:, vsl],
                                 (((1,), (0,)), ((), ())),
                                 preferred_element_type=jnp.float32)       # (tq, hd)
        m_cols.append(m_h)
        l_cols.append(l_h)
        acc_cols.append(alpha * acc_prev[:, sl] + pv)

    m_ref[...] = jnp.concatenate(m_cols, axis=-1)
    l_ref[...] = jnp.concatenate(l_cols, axis=-1)
    acc_ref[...] = jnp.concatenate(acc_cols, axis=-1)

    @pl.when(kvi == pl.num_programs(2) - 1)
    def _fin():
        # (tq, head) reciprocal only (EUP), broadcast per head for the final multiply.
        inv_l = pl.reciprocal(l_ref[...], approx=True)
        acc = acc_ref[...]
        parts = [acc[:, h * head_dim:(h + 1) * head_dim] * inv_l[:, h:h + 1]
                 for h in range(head)]
        o = jnp.concatenate(parts, axis=-1)                                # (tq, H*hd) f32
        # fused output projection: wproj resident in VMEM (bf16), no HBM round trip
        o = jnp.dot(o.astype(wp_ref.dtype), wp_ref[...],
                    preferred_element_type=jnp.float32)                    # (tq, dim)
        o_ref[0] = (o + bp_ref[...].astype(jnp.float32)).astype(o_ref.dtype)


def pallas_attention_proj(q, kv, wproj, bproj, head, head_dim, out_dtype,
                          *, tq=256, tkv=128):
    # q: (B, N, H*hd) bf16   kv: (B, M, 2*H*hd) bf16   -> out (B, N, dim) out_dtype
    B, N, inner = q.shape
    M = kv.shape[1]
    dim = wproj.shape[1]
    tq = _pick_tile(N, tq, 128)
    tkv = _pick_tile(M, tkv, 128)
    nb = q.dtype.itemsize
    cost = pl.CostEstimate(
        flops=4 * B * N * M * inner + 2 * B * N * inner * dim,
        transcendentals=B * head * N * M,
        bytes_accessed=(B * N * inner + 2 * B * M * inner + inner * dim) * nb
                       + B * N * dim * 4)
    kern = functools.partial(_attn_kernel, head=head, head_dim=head_dim)
    return pl.pallas_call(
        kern,
        out_shape=jax.ShapeDtypeStruct((B, N, dim), out_dtype),
        grid=(B, N // tq, M // tkv),
        in_specs=[pl.BlockSpec((1, tq, inner), lambda b, qi, ki: (b, qi, 0)),
                  pl.BlockSpec((1, tkv, 2 * inner), lambda b, qi, ki: (b, ki, 0)),
                  pl.BlockSpec((inner, dim), lambda b, qi, ki: (0, 0)),
                  pl.BlockSpec((1, dim), lambda b, qi, ki: (0, 0))],
        out_specs=pl.BlockSpec((1, tq, dim), lambda b, qi, ki: (b, qi, 0)),
        scratch_shapes=[pltpu.VMEM((tq, head), jnp.float32),    # running max per head
                        pltpu.VMEM((tq, head), jnp.float32),    # running denominator per head
                        pltpu.VMEM((tq, inner), jnp.float32)],  # output accumulator
        compiler_params=pltpu.CompilerParams(
            dimension_semantics=("parallel", "parallel", "arbitrary"),
            vmem_limit_bytes=_VMEM_LIMIT),
        cost_estimate=cost,
    )(q, kv, wproj, bproj.reshape(1, -1))


# --------------------------------------------------------------------------- module
class AttentionPallas:
    """Mirrors model/base.py::Attention.forward with Pallas TPU kernels (bf16 MXU path)."""

    def __init__(self, dim, head, head_dim=None, sr_ratio=1, *, key):
        self.dim = dim
        self.head = head
        self.head_dim = head_dim or dim // head
        self.inner_dim = self.head_dim * head
        self.sr_ratio = sr_ratio
        self.scale = self.head_dim ** (-0.5)

        def uinit(k, shape, fan_in):
            bound = 1.0 / (fan_in ** 0.5)
            return jax.random.uniform(k, shape, jnp.float32, -bound, bound)

        ks = list(jax.random.split(key, 10))
        # f32 master weights, stored as (in, out) so kernels compute x @ W
        self.wq = uinit(ks[0], (dim, self.inner_dim), dim)
        self.bq = uinit(ks[1], (self.inner_dim,), dim)
        self.wkv = uinit(ks[2], (dim, 2 * self.inner_dim), dim)
        self.bkv = uinit(ks[3], (2 * self.inner_dim,), dim)
        self.wproj = uinit(ks[4], (self.inner_dim, dim), self.inner_dim)
        self.bproj = uinit(ks[5], (dim,), self.inner_dim)

        # bf16 kernel weights; softmax scale folded into the q projection (free)
        self.wq_k = (self.wq * self.scale).astype(jnp.bfloat16)
        self.bq_k = self.bq * self.scale                       # bias stays f32
        self.wkv_k = self.wkv.astype(jnp.bfloat16)
        self.wproj_k = self.wproj.astype(jnp.bfloat16)

        if sr_ratio > 1:
            # Conv1d(dim, dim, sr, sr) weight: (out=dim, in=dim, k=sr)
            wconv = uinit(ks[6], (dim, dim, sr_ratio), dim * sr_ratio)
            self.bconv = uinit(ks[7], (dim,), dim * sr_ratio)
            # flatten so patch index j*dim + c matches x.reshape(B, N//sr, sr*dim)
            self.wconv_flat = jnp.transpose(wconv, (2, 1, 0)).reshape(sr_ratio * dim, dim)
            self.wconv_k = self.wconv_flat.astype(jnp.bfloat16)
            self.ln_g = jnp.ones((dim,), jnp.float32)
            self.ln_b = jnp.zeros((dim,), jnp.float32)

    def __call__(self, x):
        B, N, dim = x.shape
        inner = self.inner_dim
        xb = x.astype(jnp.bfloat16)                            # bf16 activations on the MXU

        if self.sr_ratio == 1:
            # fused q / kv projection: x read from HBM once
            q2d, kv2d = pallas_qkv(xb.reshape(B * N, dim),
                                   self.wq_k, self.bq_k, self.wkv_k, self.bkv)
            q = q2d.reshape(B, N, inner)                       # free reshapes (contiguous)
            kv = kv2d.reshape(B, N, 2 * inner)
        else:
            assert N % self.sr_ratio == 0, "sequence length must be divisible by sr_ratio"
            sr = self.sr_ratio
            M = N // sr
            q = pallas_linear(xb.reshape(B * N, dim),
                              self.wq_k, self.bq_k).reshape(B, N, inner)
            # strided conv (k=stride=sr) as a K-tiled patch matmul, fused with LayerNorm
            patches = xb.reshape(B * M, sr * dim)
            x_kv = pallas_conv_ln(patches, self.wconv_k, self.bconv,
                                  self.ln_g, self.ln_b)
            kv = pallas_linear(x_kv, self.wkv_k, self.bkv).reshape(B, M, 2 * inner)

        # flash attention with the output projection fused into the finalize step
        return pallas_attention_proj(q, kv, self.wproj_k, self.bproj,
                                     self.head, self.head_dim, out_dtype=x.dtype)

    # Mixed-precision pure-JAX reference mirroring the kernel numerics (bf16 matmul
    # operands / intermediates, f32 accumulation).  Differences vs. the Pallas path are
    # only accumulation order and the approximate softmax reciprocal.
    def reference(self, x):
        B, N, dim = x.shape
        H, hd, inner = self.head, self.head_dim, self.inner_dim
        f32 = jnp.float32
        bf = lambda a: a.astype(jnp.bfloat16)
        up = lambda a: a.astype(f32)

        xb = bf(x)
        q2d = up(xb.reshape(B * N, dim)) @ up(self.wq_k) + self.bq_k   # scale folded in
        q = up(bf(q2d)).reshape(B, N, H, hd).transpose(0, 2, 1, 3)

        if self.sr_ratio > 1:
            sr = self.sr_ratio
            M = N // sr
            patches = up(xb).reshape(B * M, sr * dim)
            y = patches @ up(self.wconv_k) + self.bconv
            mu = jnp.mean(y, -1, keepdims=True)
            var = jnp.mean((y - mu) ** 2, -1, keepdims=True)
            y = (y - mu) * jax.lax.rsqrt(var + 1e-5) * self.ln_g + self.ln_b
            xkv2d = bf(y)
        else:
            M = N
            xkv2d = xb.reshape(B * N, dim)

        kv2d = up(xkv2d) @ up(self.wkv_k) + self.bkv
        kv = up(bf(kv2d))
        k = kv[:, :inner].reshape(B, M, H, hd).transpose(0, 2, 1, 3)
        v = kv[:, inner:].reshape(B, M, H, hd).transpose(0, 2, 1, 3)

        s = jnp.einsum("bhnd,bhmd->bhnm", q, k)            # scale already applied via wq_k
        p = jax.nn.softmax(s, axis=-1)
        p = up(bf(p))                                       # kernel feeds bf16 probs to the MXU
        o = jnp.einsum("bhnm,bhmd->bhnd", p, v).transpose(0, 2, 1, 3).reshape(B * N, inner)
        o = up(bf(o))                                       # cast before the fused out-projection
        out = o @ up(self.wproj_k) + self.bproj
        return out.reshape(B, N, dim).astype(x.dtype)


# --------------------------------------------------------------------------- main
if __name__ == "__main__":
    key = jax.random.PRNGKey(0)
    kx, kp1, kp2 = jax.random.split(key, 3)

    B, N, dim, head = 2, 16, 32, 4          # head_dim = 8, inner_dim = 32
    x = jax.random.normal(kx, (B, N, dim), jnp.float32)

    # sr_ratio > 1 path (fused strided-conv + LayerNorm reduction on kv)
    attn_sr = AttentionPallas(dim=dim, head=head, sr_ratio=2, key=kp1)
    out_sr = jax.block_until_ready(attn_sr(x))
    ref_sr = attn_sr.reference(x)
    assert out_sr.shape == (B, N, dim)
    assert jnp.allclose(out_sr, ref_sr, atol=1e-2, rtol=1e-2), "sr>1 mismatch vs reference"

    # sr_ratio == 1 path (fused q+kv projection)
    attn_plain = AttentionPallas(dim=dim, head=head, sr_ratio=1, key=kp2)
    out_plain = jax.block_until_ready(attn_plain(x))
    ref_plain = attn_plain.reference(x)
    assert out_plain.shape == (B, N, dim)
    assert jnp.allclose(out_plain, ref_plain, atol=1e-2, rtol=1e-2), "sr=1 mismatch vs reference"

    print("KERNEL_OK")
</pallas_src>

<mosaic_0001>
module attributes {stable_mosaic.version = 11 : i64} {
  func.func @_linear_kernel(%arg0: i32, %arg1: i32, %arg2: i32, %arg3: memref<32x32xbf16, #tpu.memory_space<vmem>>, %arg4: memref<32x32xbf16, #tpu.memory_space<vmem>>, %arg5: memref<1x32xf32, #tpu.memory_space<vmem>>, %arg6: memref<32x32xbf16, #tpu.memory_space<vmem>>, %arg7: memref<32x32xf32, #tpu.memory_space<vmem>>) attributes {dimension_semantics = [#tpu.dimension_semantics<parallel>, #tpu.dimension_semantics<parallel>, #tpu.dimension_semantics<arbitrary>], iteration_bounds = array<i64: 1, 1, 1>, scalar_prefetch = 0 : i64, scratch_operands = 1 : i64, tpu.core_type = #tpu.core_type<tc>, window_params = [{transform_indices = @transform_0, window_bounds = array<i64: 32, 32>}, {transform_indices = @transform_1, window_bounds = array<i64: 32, 32>}, {transform_indices = @transform_2, window_bounds = array<i64: 1, 32>}, {transform_indices = @transform_3, window_bounds = array<i64: 32, 32>}]} {
    %c0_i32 = arith.constant 0 : i32
    %0 = arith.cmpi eq, %arg2, %c0_i32 : i32
    %1 = arith.extui %0 : i1 to i32
    %c0_i32_0 = arith.constant 0 : i32
    %2 = arith.cmpi ne, %1, %c0_i32_0 : i32
    scf.if %2 {
      %cst_10 = arith.constant 0.000000e+00 : f32
      %12 = vector.broadcast %cst_10 : f32 to vector<32x32xf32>
      %c0_11 = arith.constant 0 : index
      %c0_12 = arith.constant 0 : index
      %13 = vector.load %arg7[%c0_11, %c0_12] : memref<32x32xf32, #tpu.memory_space<vmem>>, vector<32x32xf32>
      tpu.vector_store %arg7[%c0_11, %c0_12], %12 {strides = array<i32>} : memref<32x32xf32, #tpu.memory_space<vmem>>, vector<32x32xf32>,
    } else {
    }
    %c0 = arith.constant 0 : index
    %c0_1 = arith.constant 0 : index
    %3 = vector.load %arg7[%c0, %c0_1] : memref<32x32xf32, #tpu.memory_space<vmem>>, vector<32x32xf32>
    %c0_2 = arith.constant 0 : index
    %c0_3 = arith.constant 0 : index
    %4 = vector.load %arg3[%c0_2, %c0_3] : memref<32x32xbf16, #tpu.memory_space<vmem>>, vector<32x32xbf16>
    %c0_4 = arith.constant 0 : index
    %c0_5 = arith.constant 0 : index
    %5 = vector.load %arg4[%c0_4, %c0_5] : memref<32x32xbf16, #tpu.memory_space<vmem>>, vector<32x32xbf16>
    %cst = arith.constant dense<0.000000e+00> : vector<32x32xf32>
    %6 = tpu.matmul %4, %5, %cst {dimension_numbers = #tpu.dot_dimension_numbers<[1], [0], [0], [1], [0, 0, 1, 1], [], []>} : vector<32x32xbf16>, vector<32x32xbf16>, vector<32x32xf32> -> vector<32x32xf32>
    %7 = arith.addf %3, %6 : vector<32x32xf32>
    %c0_6 = arith.constant 0 : index
    %c0_7 = arith.constant 0 : index
    %8 = vector.load %arg7[%c0_6, %c0_7] : memref<32x32xf32, #tpu.memory_space<vmem>>, vector<32x32xf32>
    tpu.vector_store %arg7[%c0_6, %c0_7], %7 {strides = array<i32>} : memref<32x32xf32, #tpu.memory_space<vmem>>, vector<32x32xf32>,
    %c0_i32_8 = arith.constant 0 : i32
    %9 = arith.cmpi eq, %arg2, %c0_i32_8 : i32
    %10 = arith.extui %9 : i1 to i32
    %c0_i32_9 = arith.constant 0 : i32
    %11 = arith.cmpi ne, %10, %c0_i32_9 : i32
    scf.if %11 {
      %c0_10 = arith.constant 0 : index
      %c0_11 = arith.constant 0 : index
      %12 = vector.load %arg7[%c0_10, %c0_11] : memref<32x32xf32, #tpu.memory_space<vmem>>, vector<32x32xf32>
      %c0_12 = arith.constant 0 : index
      %c0_13 = arith.constant 0 : index
      %13 = vector.load %arg5[%c0_12, %c0_13] : memref<1x32xf32, #tpu.memory_space<vmem>>, vector<1x32xf32>
      %14 = vector.broadcast %13 : vector<1x32xf32> to vector<32x32xf32>
      %15 = arith.addf %12, %14 : vector<32x32xf32>
      %16 = arith.truncf %15 : vector<32x32xf32> to vector<32x32xbf16>
      %c0_14 = arith.constant 0 : index
      %c0_15 = arith.constant 0 : index
      %17 = vector.load %arg6[%c0_14, %c0_15] : memref<32x32xbf16, #tpu.memory_space<vmem>>, vector<32x32xbf16>
      tpu.vector_store %arg6[%c0_14, %c0_15], %16 {strides = array<i32>} : memref<32x32xbf16, #tpu.memory_space<vmem>>, vector<32x32xbf16>,
    } else {
    }
    return
  }
  func.func @transform_0(%arg0: i32, %arg1: i32, %arg2: i32) -> (i32, i32) {
    %c0_i32 = arith.constant 0 : i32
    return %arg0, %arg2 : i32, i32
  }
  func.func @transform_1(%arg0: i32, %arg1: i32, %arg2: i32) -> (i32, i32) {
    %c0_i32 = arith.constant 0 : i32
    return %arg2, %arg1 : i32, i32
  }
  func.func @transform_2(%arg0: i32, %arg1: i32, %arg2: i32) -> (i32, i32) {
    %c0_i32 = arith.constant 0 : i32
    %c0_i32_0 = arith.constant 0 : i32
    return %c0_i32, %arg1 : i32, i32
  }
  func.func @transform_3(%arg0: i32, %arg1: i32, %arg2: i32) -> (i32, i32) {
    %c0_i32 = arith.constant 0 : i32
    return %arg0, %arg1 : i32, i32
  }
}

</mosaic_0001>

<llo_original>
// kernel: tpu_custom_call.1
$region0: #{tpu_custom_call.1}
  #allocation0 [shape = 'u32[]', space=smem, size = 0x4, offset = 0x4, fixed_abs, tag = 'smem constant byte address 0x4 - core index']
  #allocation1 [shape = 'u32[72,128]{1,0:T(1,128)}', space=vmem, size = 0x9000, scoped, tag = 'internal scratch']
  #allocation2 [shape = 'f32[32,32]{1,0:T(8,128)}', space=vmem, size = 0x4000, scoped, tag = 'scratch operand']
  %s0 = inlined_call_operand.hbm [shape: bf16[32,32], index: 0, kind: input, shape index: {}]
  %s1 = inlined_call_operand.hbm [shape: bf16[32,32], index: 1, kind: input, shape index: {}]
  %s2 = inlined_call_operand.vmem [shape: f32[1,32], index: 2, kind: input, shape index: {}]
  %s3 = inlined_call_operand.hbm [shape: bf16[32,32], index: 3, kind: output, shape index: {}]
  %s4 = sld [smem:[#allocation0]]
  $region38: #{tpu_custom_call.1} parent=0
    _
  %s6 = ssub.s32 1, %s4
  %s7 = scalar_select 0, %s6, %s4
  $region1: #{tpu_custom_call.1} parent=0
    #allocation3 [shape = 'u8[8192]{0}', space=vmem, size = 0x2000, scoped, tag = 'input window, operand 0, single buffered']
    #allocation4 [shape = 's32[1]{0}', space=sflag, size = 0x4, scoped, tag = 'scoped memory for tpu_custom_call.1']
    #allocation5 [shape = 's32[1]{0}', space=sflag, size = 0x4, scoped, tag = 'scoped memory for tpu_custom_call.1']
    #allocation6 [shape = 'u8[8192]{0}', space=vmem, size = 0x2000, scoped, tag = 'input window, operand 1, single buffered']
    #allocation7 [shape = 's32[1]{0}', space=sflag, size = 0x4, scoped, tag = 'scoped memory for tpu_custom_call.1']
    #allocation8 [shape = 'u8[8192]{0}', space=vmem, size = 0x2000, scoped, tag = 'output window, operand 0, single buffered']
    %8 = vsyncpa [#allocation4], 0
    %9 = vsyncpa [#allocation7], 0
    %10 = vsyncpa [#allocation5], 0
    // Predicated region
    $region2: #{tpu_custom_call.1} parent=1 // pred_check
      _
    $region3: #{tpu_custom_call.1} parent=1 // pred_check_branch
      %12 = sbr.rel (0) target = $region5
    $region4: #{tpu_custom_call.1} parent=1 // pred_region
      %14 = vsyncadd [#allocation4], 0
      %s15 = sshll.u32 %s0, 4
      %s16 = int_to_ptr.hbm [resolvable:$true] %s15
      %s17 = sshll.u32 [#allocation3], 4
      %s18 = int_to_ptr.vmem [resolvable:$true] %s17
      %23 = dma.hbm_to_vmem [thread:$0]  %s16, 256, %s18, [#allocation4], 64, 64, 4
    $region5: #{tpu_custom_call.1} parent=1 // pred_fallthru
      _
    // Predicated region
    $region6: #{tpu_custom_call.1} parent=1 // pred_check
      _
    $region7: #{tpu_custom_call.1} parent=1 // pred_check_branch
      %25 = sbr.rel (0) target = $region9
    $region8: #{tpu_custom_call.1} parent=1 // pred_region
      %27 = vsyncadd [#allocation7], 0
      %s28 = sshll.u32 %s1, 4
      %s29 = int_to_ptr.hbm [resolvable:$true] %s28
      %s30 = sshll.u32 [#allocation6], 4
      %s31 = int_to_ptr.vmem [resolvable:$true] %s30
      %36 = dma.hbm_to_vmem [thread:$0]  %s29, 256, %s31, [#allocation7], 64, 64, 4
    $region9: #{tpu_custom_call.1} parent=1 // pred_fallthru
      _
    // Predicated region
    $region10: #{tpu_custom_call.1} parent=1 // pred_check
      _
    $region11: #{tpu_custom_call.1} parent=1 // pred_check_branch
      %38 = sbr.rel (0) target = $region13
    $region12: #{tpu_custom_call.1} parent=1 // pred_region
      _
    $region13: #{tpu_custom_call.1} parent=1 // pred_fallthru
      _
    // Predicated region
    $region14: #{tpu_custom_call.1} parent=1 // pred_check
      _
    $region15: #{tpu_custom_call.1} parent=1 // pred_check_branch
      %40 = sbr.rel (0) target = $region17
    $region16: #{tpu_custom_call.1} parent=1 // pred_region
      %42 = dma.done [#allocation4], 256
    $region17: #{tpu_custom_call.1} parent=1 // pred_fallthru
      _
    // Predicated region
    $region18: #{tpu_custom_call.1} parent=1 // pred_check
      _
    $region19: #{tpu_custom_call.1} parent=1 // pred_check_branch
      %44 = sbr.rel (0) target = $region21
    $region20: #{tpu_custom_call.1} parent=1 // pred_region
      %46 = dma.done [#allocation7], 256
    $region21: #{tpu_custom_call.1} parent=1 // pred_fallthru
      _
    %p48 = scmp.eq.s32.totalorder 0, 0
    // Predicated region
    $region22: #{tpu_custom_call.1} parent=1 // pred_check
      %p49 = pneg %p48
    $region23: #{tpu_custom_call.1} parent=1 // pred_check_branch
      %51 = sbr.rel (%p49) target = $region25
    $region24: #{tpu_custom_call.1} parent=1 // pred_region
      %vm52 = vcmask 261120
      %53 = vst.msk [vmem:[#allocation2] sm:$0xff] %vm52, 0.0
      %54 = vst.msk [vmem:[#allocation2 + $0x8] sm:$0xff] %vm52, 0.0
      %55 = vst.msk [vmem:[#allocation2 + $0x10] sm:$0xff] %vm52, 0.0
      %56 = vst.msk [vmem:[#allocation2 + $0x18] sm:$0xff] %vm52, 0.0
    $region25: #{tpu_custom_call.1} parent=1 // pred_fallthru
      _
    %v57 = vld [vmem:[#allocation2] sm:$0xff]
    %v58 = vld [vmem:[#allocation2 + $0x8] sm:$0xff]
    %v59 = vld [vmem:[#allocation2 + $0x10] sm:$0xff]
    %v60 = vld [vmem:[#allocation2 + $0x18] sm:$0xff]
    %v61 = vld [vmem:[#allocation3] sm:$0xf]
    %v62 = vld [vmem:[#allocation3 + $0x4] sm:$0xf]
    %v63 = vld [vmem:[#allocation3 + $0x8] sm:$0xf]
    %v64 = vld [vmem:[#allocation3 + $0xc] sm:$0xf]
    %v65 = vld [vmem:[#allocation6] sm:$0xf]
    %v66 = vld [vmem:[#allocation6 + $0x4] sm:$0xf]
    %v67 = vld [vmem:[#allocation6 + $0x8] sm:$0xf]
    %v68 = vld [vmem:[#allocation6 + $0xc] sm:$0xf]
    %v73 = vunpack.c.l.b16 %v61
    %v74 = vunpack.c.l.b16 %v62
    %v75 = vunpack.c.l.b16 %v63
    %v76 = vunpack.c.l.b16 %v64
    %v77 = vpack.c.b16 %v74, %v73
    %v78 = vpack.c.b16 %v76, %v75
    %v83 = vunpack.c.l.b16 %v65
    %v84 = vunpack.c.l.b16 %v66
    %v85 = vunpack.c.l.b16 %v67
    %v86 = vunpack.c.l.b16 %v68
    %v87 = vpack.c.b16 %v84, %v83
    %v88 = vpack.c.b16 %v86, %v85
    %vm91 = vcmask 261120
    %v93 = vsel %vm91, %v77, 0
    %v96 = vsel %vm91, %v78, 0
    %98 = vmatpush.bf16.msra.mxu0 0
    %99 = vmatpush.bf16.msra.mxu0 0
    %100 = vmatpush.bf16.msra.mxu0 0
    %101 = vmatpush.bf16.msra.mxu0 0
    %102 = vmatpush.bf16.msra.mxu0 0
    %103 = vmatpush.bf16.msra.mxu0 0
    %104 = vmatpush.bf16.msra.mxu0 %v88
    %105 = vmatpush.bf16.msra.mxu0 %v87
    %106 = vmatmul.bf16.gmra.mxu0 %v93
    %v107 = vpop.f32.mrf.mxu0
    %v108 = vadd.f32 0.0, %v107
    %v109 = vpop.f32.mrf.mxu0
    %v110 = vadd.f32 0.0, %v109
    %111 = vmatmul.bf16.gmra.mxu0 %v96
    %v112 = vpop.f32.mrf.mxu0
    %v113 = vadd.f32 0.0, %v112
    %v114 = vpop.f32.mrf.mxu0
    %v115 = vadd.f32 0.0, %v114
    %116 = vdwg.mxu0
    %v117 = vadd.f32 %v57, %v108
    %v118 = vadd.f32 %v58, %v110
    %v119 = vadd.f32 %v59, %v113
    %v120 = vadd.f32 %v60, %v115
    %121 = vst.msk [vmem:[#allocation2] sm:$0xff] %vm91, %v117
    %122 = vst.msk [vmem:[#allocation2 + $0x8] sm:$0xff] %vm91, %v118
    %123 = vst.msk [vmem:[#allocation2 + $0x10] sm:$0xff] %vm91, %v119
    %124 = vst.msk [vmem:[#allocation2 + $0x18] sm:$0xff] %vm91, %v120
    // Predicated region
    $region26: #{tpu_custom_call.1} parent=1 // pred_check
      %p125 = pneg %p48
    $region27: #{tpu_custom_call.1} parent=1 // pred_check_branch
      %127 = sbr.rel (%p125) target = $region29
    $region28: #{tpu_custom_call.1} parent=1 // pred_region
      %v128 = vld [vmem:[#allocation2] sm:$0xff]
      %v129 = vld [vmem:[#allocation2 + $0x8] sm:$0xff]
      %v130 = vld [vmem:[#allocation2 + $0x10] sm:$0xff]
      %v131 = vld [vmem:[#allocation2 + $0x18] sm:$0xff]
      %v132 = vld [vmem:[%s2] sm:$0x1]
      %v134 = vperm.slane %v132, 0
      %v136 = vadd.f32 %v128, %v134
      %v137 = vadd.f32 %v129, %v134
      %v138 = vadd.f32 %v130, %v134
      %v139 = vadd.f32 %v131, %v134
      %v140 = vpack.c.bf16 %v136, %v136
      %v141 = vpack.c.bf16 %v137, %v137
      %v142 = vpack.c.bf16 %v138, %v138
      %v143 = vpack.c.bf16 %v139, %v139
      %vm144 = vcmask 257024
      %145 = vst.msk [vmem:[#allocation8] sm:$0xf] %vm144, %v140
      %146 = vst.msk [vmem:[#allocation8 + $0x4] sm:$0xf] %vm144, %v141
      %147 = vst.msk [vmem:[#allocation8 + $0x8] sm:$0xf] %vm144, %v142
      %148 = vst.msk [vmem:[#allocation8 + $0xc] sm:$0xf] %vm144, %v143
    $region29: #{tpu_custom_call.1} parent=1 // pred_fallthru
      _
    // Predicated region
    $region30: #{tpu_custom_call.1} parent=1 // pred_check
      _
    $region31: #{tpu_custom_call.1} parent=1 // pred_check_branch
      %150 = sbr.rel (0) target = $region33
    $region32: #{tpu_custom_call.1} parent=1 // pred_region
      %152 = vsyncadd [#allocation5], 0
      %s153 = sshll.u32 [#allocation8], 4
      %s154 = int_to_ptr.vmem [resolvable:$true] %s153
      %s155 = sshll.u32 %s3, 4
      %s156 = int_to_ptr.hbm [resolvable:$true] %s155
      %161 = dma.vmem_to_hbm [thread:$0]  %s154, 256, %s156, [#allocation5], 64, 64, 4
    $region33: #{tpu_custom_call.1} parent=1 // pred_fallthru
      _
    // Predicated region
    $region34: #{tpu_custom_call.1} parent=1 // pred_check
      _
    $region35: #{tpu_custom_call.1} parent=1 // pred_check_branch
      %163 = sbr.rel (0) target = $region37
    $region36: #{tpu_custom_call.1} parent=1 // pred_region
      %165 = dma.done [#allocation5], 256
    $region37: #{tpu_custom_call.1} parent=1 // pred_fallthru
      _
    %166 = vsyncpa [#allocation4], 1
    %167 = vsyncpa [#allocation7], 1
    %168 = vsyncpa [#allocation5], 1

</llo_original>
